<compile_context>
chip_gen: v6e
topology: v6e:2x2x1
jax: 0.10.0
libtpu: 0.0.40
codegen_flags: <defaults>
</compile_context>

<pallas_src>
import functools
import math

import jax
import jax.numpy as jnp
from jax.experimental import pallas as pl
from jax.experimental.pallas import tpu as pltpu

EPS = 1e-5
NCORES = 2                      # leading "parallel" axis: v7x megacore split
SUBLANES = 8
PASS1_VMEM_BUDGET = 20 * 2 ** 20
PASS2_VMEM_BUDGET = 16 * 2 ** 20


def _round_up(x, m):
    return -(-x // m) * m


def _round_down(x, m):
    return (x // m) * m


# ----------------------------- Pass 1 kernels -------------------------------
def _conv_stats_kernel(lhs_ref, wbd_ref, y_ref, stat_ref):
    """Folded conv matmul (bf16 operands, f32 acc) + f32 batch-stat partials."""
    y = jnp.dot(lhs_ref[...], wbd_ref[...], preferred_element_type=jnp.float32)
    y_ref[...] = y.astype(y_ref.dtype)      # bf16, lane-dense (fold*OC % 128 == 0)

    @pl.when(pl.program_id(1) == 0)         # first M-tile handled by this core
    def _():
        stat_ref[...] = jnp.zeros_like(stat_ref)

    lanes = y.shape[-1]
    # Sublane-aligned (8, fold*OC) partial reductions: full-vreg VPU adds, no
    # concat, no (2, OC) sub-vreg stores.  Final reduction over the 8 rows,
    # the fold groups and the cores happens in the tiny O(OC) host glue.
    stat_ref[0:SUBLANES, :] += y.reshape(-1, SUBLANES, lanes).sum(axis=0)
    stat_ref[SUBLANES:2 * SUBLANES, :] += (y * y).reshape(-1, SUBLANES, lanes).sum(axis=0)


def _conv_affine_relu_kernel(lhs_ref, wbd_ref, scale_ref, shift_ref, o_ref):
    """is_batchnorm=False fast path: conv + bias + ReLU fused into one pass."""
    y = jnp.dot(lhs_ref[...], wbd_ref[...], preferred_element_type=jnp.float32)
    o_ref[...] = jnp.maximum(y * scale_ref[...] + shift_ref[...], 0.0)


# ----------------------------- Pass 2 kernel --------------------------------
def _affine_relu_kernel(y_ref, scale_ref, shift_ref, o_ref):
    y = y_ref[...].astype(jnp.float32)
    o_ref[...] = jnp.maximum(y * scale_ref[...] + shift_ref[...], 0.0)


# ------------------------------- host glue ----------------------------------
def _im2col_nhwc(x_nhwc, kh, kw, stride, padding, dilation):
    """Extract conv patches. Returns (N*OH*OW, kh*kw*C) with (i, j, c) ordering."""
    n, h, w, c = x_nhwc.shape
    xp = jnp.pad(x_nhwc, ((0, 0), (padding, padding), (padding, padding), (0, 0)))
    hp, wp = h + 2 * padding, w + 2 * padding
    oh = (hp - dilation * (kh - 1) - 1) // stride + 1
    ow = (wp - dilation * (kw - 1) - 1) // stride + 1
    cols = []
    for i in range(kh):
        for j in range(kw):
            sl = xp[:,
                    i * dilation:i * dilation + (oh - 1) * stride + 1:stride,
                    j * dilation:j * dilation + (ow - 1) * stride + 1:stride,
                    :]
            cols.append(sl)
    patches = jnp.concatenate(cols, axis=-1)             # (N, OH, OW, kh*kw*C)
    # TODO(synk): replace this materialized KH*KW-duplicated matrix with
    # in-kernel tap streaming (halo-strip DMA over the padded NHWC input).
    return patches.reshape(n * oh * ow, kh * kw * c), oh, ow


def _fold_factor(k, oc):
    fold = 128 // math.gcd(oc, 128)            # fold*OC = lcm(OC, 128)
    if fold > 1 and (fold * k) * (fold * oc) * 2 > (8 << 20):
        fold = 1                               # keep the block-diag weight small
    return fold


def _plan_pass1(rows, fold, k, oc):
    """VMEM-budget-aware tile plan for the folded matmul pass."""
    foldk, foldoc = fold * k, fold * oc
    wbd_bytes = foldk * foldoc * 2
    per_row = 2 * (foldk + foldoc)             # bf16 LHS row + bf16 Y row
    budget_rows = max(16, (PASS1_VMEM_BUDGET - 2 * wbd_bytes) // (2 * per_row))
    rows_per_core = _round_up(rows, NCORES) // NCORES
    tile_rows = min(int(budget_rows), _round_up(rows_per_core, 16))
    tile_rows = max(16, _round_down(tile_rows, 16))
    tiles_per_core = _round_up(rows_per_core, tile_rows) // tile_rows
    rows_pad = NCORES * tiles_per_core * tile_rows
    est = 2 * tile_rows * per_row + 2 * wbd_bytes + 2 * 2 * SUBLANES * foldoc * 4
    vmem = int(min(48 << 20, max(24 << 20, 2 * est)))
    return tile_rows, tiles_per_core, rows_pad, vmem


def _plan_pass2(n_tiles_total, tile_rows, foldoc):
    per_row = foldoc * (2 + 4)                 # bf16 in + f32 out
    budget_rows = max(16, PASS2_VMEM_BUDGET // (2 * per_row))
    chunk = 1
    for d in range(n_tiles_total, 0, -1):
        if n_tiles_total % d == 0 and d * tile_rows <= budget_rows:
            chunk = d
            break
    tile_r2 = chunk * tile_rows
    vmem = int(min(48 << 20, max(24 << 20, 4 * tile_r2 * per_row)))
    return tile_r2, n_tiles_total // chunk, vmem


@functools.partial(jax.jit,
                   static_argnames=("stride", "padding", "dilation", "is_batchnorm"))
def conv2d_batchnorm_relu(x_nchw, weight_oihw, bias, gamma, beta, *,
                          stride, padding, dilation, is_batchnorm=True):
    n, c_in, h, w = x_nchw.shape
    oc, _, kh, kw = weight_oihw.shape

    # ---- layout plumbing (plain JAX) ----
    x_nhwc = jnp.transpose(x_nchw, (0, 2, 3, 1)).astype(jnp.bfloat16)
    patches, oh, ow = _im2col_nhwc(x_nhwc, kh, kw, stride, padding, dilation)
    k = kh * kw * c_in
    w_mat = jnp.transpose(weight_oihw, (2, 3, 1, 0)).reshape(k, oc).astype(jnp.float32)

    m = n * oh * ow
    fold = _fold_factor(k, oc)
    foldk, foldoc = fold * k, fold * oc
    # Block-diagonal weights: (P viewed (M/fold, fold*K)) @ W_bd equals the conv
    # output viewed (M/fold, fold*OC), so the MXU emits a 128-lane-dense tile.
    w_bd = jnp.kron(jnp.eye(fold, dtype=jnp.float32), w_mat).astype(jnp.bfloat16)

    rows = _round_up(m, fold) // fold
    tile_rows, tiles_per_core, rows_pad, vmem1 = _plan_pass1(rows, fold, k, oc)
    m_pad = rows_pad * fold
    if m_pad != m:
        # Zero rows contribute 0 to sum / sum-of-squares (no bias added in the
        # kernel), so dividing by the true M keeps the statistics exact.
        patches = jnp.pad(patches, ((0, m_pad - m), (0, 0)))
    lhs = patches.reshape(rows_pad, foldk)      # zero-copy row-major reinterpret

    n_tiles_total = NCORES * tiles_per_core
    lhs_spec = pl.BlockSpec((tile_rows, foldk),
                            lambda c, t: (c * tiles_per_core + t, 0))
    wbd_spec = pl.BlockSpec((foldk, foldoc), lambda c, t: (0, 0))   # resident
    y_spec = pl.BlockSpec((tile_rows, foldoc),
                          lambda c, t: (c * tiles_per_core + t, 0))
    vec_spec = pl.BlockSpec((1, foldoc), lambda c, t: (0, 0))

    cost = pl.CostEstimate(
        flops=2 * m_pad * k * oc, transcendentals=0,
        bytes_accessed=lhs.size * 2 + w_bd.size * 2 + rows_pad * foldoc * 4)

    if not is_batchnorm:
        # Scale/shift known up front -> fuse bias + ReLU into pass 1, no pass 2.
        scale = jnp.ones((oc,), jnp.float32)
        shift = (jnp.zeros((oc,), jnp.float32) if bias is None
                 else bias.astype(jnp.float32))
        scale_f = jnp.tile(scale, fold).reshape(1, foldoc)
        shift_f = jnp.tile(shift, fold).reshape(1, foldoc)
        out_fold = pl.pallas_call(
            _conv_affine_relu_kernel,
            out_shape=jax.ShapeDtypeStruct((rows_pad, foldoc), jnp.float32),
            grid_spec=pltpu.PrefetchScalarGridSpec(
                num_scalar_prefetch=0,
                grid=(NCORES, tiles_per_core),
                in_specs=[lhs_spec, wbd_spec, vec_spec, vec_spec],
                out_specs=y_spec),
            compiler_params=pltpu.CompilerParams(
                dimension_semantics=("parallel", "parallel"),
                vmem_limit_bytes=vmem1),
            cost_estimate=cost,
        )(lhs, w_bd, scale_f, shift_f)
    else:
        # ---- pass 1: folded conv matmul -> bf16 Y + per-core f32 stat partials
        y_fold, stats = pl.pallas_call(
            _conv_stats_kernel,
            out_shape=(jax.ShapeDtypeStruct((rows_pad, foldoc), jnp.bfloat16),
                       jax.ShapeDtypeStruct((NCORES * 2 * SUBLANES, foldoc),
                                            jnp.float32)),
            grid_spec=pltpu.PrefetchScalarGridSpec(
                num_scalar_prefetch=0,
                grid=(NCORES, tiles_per_core),
                in_specs=[lhs_spec, wbd_spec],
                out_specs=(y_spec,
                           pl.BlockSpec((2 * SUBLANES, foldoc),
                                        lambda c, t: (c, 0)))),   # per-core accum
            compiler_params=pltpu.CompilerParams(
                dimension_semantics=("parallel", "arbitrary"),
                vmem_limit_bytes=vmem1),
            cost_estimate=cost,
        )(lhs, w_bd)

        # ---- tiny O(OC) glue in f32: reduce partials, fold BN into scale/shift
        s = stats.reshape(NCORES, 2, SUBLANES, fold, oc).sum(axis=(0, 2, 3))
        mean = s[0] / m                                   # batch mean over N,OH,OW
        var = jnp.maximum(s[1] / m - mean * mean, 0.0)    # biased batch variance
        # TODO(synk): shifted/Welford accumulation if |mean| >> std matters.
        scale = gamma.astype(jnp.float32) * jax.lax.rsqrt(var + EPS)
        shift = beta.astype(jnp.float32) - mean * scale
        # conv bias omitted on purpose: it cancels exactly against the batch mean.
        scale_f = jnp.tile(scale, fold).reshape(1, foldoc)
        shift_f = jnp.tile(shift, fold).reshape(1, foldoc)

        # ---- pass 2: lane-dense fused affine + ReLU (bf16 in, f32 out) ----
        tile_r2, n_tiles2, vmem2 = _plan_pass2(n_tiles_total, tile_rows, foldoc)
        out_fold = pl.pallas_call(
            _affine_relu_kernel,
            out_shape=jax.ShapeDtypeStruct((rows_pad, foldoc), jnp.float32),
            grid_spec=pltpu.PrefetchScalarGridSpec(
                num_scalar_prefetch=0,
                grid=(n_tiles2,),
                in_specs=[pl.BlockSpec((tile_r2, foldoc), lambda i: (i, 0)),
                          pl.BlockSpec((1, foldoc), lambda i: (0, 0)),
                          pl.BlockSpec((1, foldoc), lambda i: (0, 0))],
                out_specs=pl.BlockSpec((tile_r2, foldoc), lambda i: (i, 0))),
            compiler_params=pltpu.CompilerParams(
                dimension_semantics=("parallel",),
                vmem_limit_bytes=vmem2),
        )(y_fold, scale_f, shift_f)

    # (rows_pad, fold*OC) -> (M, OC) -> (N, OH, OW, OC) -> NCHW
    out = out_fold.reshape(m_pad, oc)[:m]
    # TODO(synk): return NHWC to skip this full-tensor transpose when allowed.
    return jnp.transpose(out.reshape(n, oh, ow, oc), (0, 3, 1, 2))


# ------------------------------- references ---------------------------------
def _reference(x_nchw, weight_oihw, bias, gamma, beta, *, stride, padding, dilation):
    conv = jax.lax.conv_general_dilated(
        x_nchw, weight_oihw,
        window_strides=(stride, stride),
        padding=[(padding, padding), (padding, padding)],
        rhs_dilation=(dilation, dilation),
        dimension_numbers=("NCHW", "OIHW", "NCHW"))
    conv = conv + bias[None, :, None, None]
    mean = conv.mean(axis=(0, 2, 3), keepdims=True)
    var = ((conv - mean) ** 2).mean(axis=(0, 2, 3), keepdims=True)   # biased, like BN fwd
    y = gamma[None, :, None, None] * (conv - mean) * jax.lax.rsqrt(var + EPS) \
        + beta[None, :, None, None]
    return jnp.maximum(y, 0.0)


def _reference_no_bn(x_nchw, weight_oihw, bias, *, stride, padding, dilation):
    conv = jax.lax.conv_general_dilated(
        x_nchw, weight_oihw,
        window_strides=(stride, stride),
        padding=[(padding, padding), (padding, padding)],
        rhs_dilation=(dilation, dilation),
        dimension_numbers=("NCHW", "OIHW", "NCHW"))
    return jnp.maximum(conv + bias[None, :, None, None], 0.0)


if __name__ == "__main__":
    # Module config: conv2DBatchNormRelu(in=4, out=16, k=3, stride=1, pad=1,
    #                                    bias=True, dilation=1, is_batchnorm=True)
    N, C_IN, H, W = 2, 4, 16, 16
    OC, KH, KW = 16, 3, 3
    STRIDE, PADDING, DILATION = 1, 1, 1

    key = jax.random.PRNGKey(0)
    kx, kw_, kb, kg, kbeta = jax.random.split(key, 5)
    x = jax.random.normal(kx, (N, C_IN, H, W), dtype=jnp.float32)
    weight = jax.random.normal(kw_, (OC, C_IN, KH, KW), dtype=jnp.float32) * 0.1
    bias = jax.random.normal(kb, (OC,), dtype=jnp.float32) * 0.1
    gamma = 1.0 + 0.1 * jax.random.normal(kg, (OC,), dtype=jnp.float32)
    beta = 0.1 * jax.random.normal(kbeta, (OC,), dtype=jnp.float32)

    # BatchNorm path (module default).
    out = conv2d_batchnorm_relu(x, weight, bias, gamma, beta,
                                stride=STRIDE, padding=PADDING, dilation=DILATION,
                                is_batchnorm=True)
    out = jax.block_until_ready(out)
    ref = _reference(x, weight, bias, gamma, beta,
                     stride=STRIDE, padding=PADDING, dilation=DILATION)
    assert out.shape == (N, OC, H, W), out.shape
    err = float(jnp.max(jnp.abs(out - ref)))
    # bf16 MXU operands + bf16 conv intermediate -> ~1e-2-level absolute error
    # on the normalized output (intentional precision loss).
    assert jnp.allclose(out, ref, atol=3e-2, rtol=3e-2), err

    # is_batchnorm=False fast path (conv + bias + ReLU fused into pass 1).
    out_nb = conv2d_batchnorm_relu(x, weight, bias, gamma, beta,
                                   stride=STRIDE, padding=PADDING,
                                   dilation=DILATION, is_batchnorm=False)
    out_nb = jax.block_until_ready(out_nb)
    ref_nb = _reference_no_bn(x, weight, bias,
                              stride=STRIDE, padding=PADDING, dilation=DILATION)
    err_nb = float(jnp.max(jnp.abs(out_nb - ref_nb)))
    assert jnp.allclose(out_nb, ref_nb, atol=2e-2, rtol=2e-2), err_nb

    print("KERNEL_OK")
</pallas_src>

<mosaic_0001>
module attributes {stable_mosaic.version = 11 : i64} {
  func.func @_conv_stats_kernel(%arg0: i32, %arg1: i32, %arg2: memref<32x288xbf16, #tpu.memory_space<vmem>>, %arg3: memref<288x128xbf16, #tpu.memory_space<vmem>>, %arg4: memref<32x128xbf16, #tpu.memory_space<vmem>>, %arg5: memref<16x128xf32, #tpu.memory_space<vmem>>) attributes {dimension_semantics = [#tpu.dimension_semantics<parallel>, #tpu.dimension_semantics<arbitrary>], iteration_bounds = array<i64: 2, 1>, scalar_prefetch = 0 : i64, scratch_operands = 0 : i64, tpu.core_type = #tpu.core_type<tc>, window_params = [{transform_indices = @transform_0, window_bounds = array<i64: 32, 288>}, {pipeline_mode = #tpu.pipeline_mode<synchronous>, transform_indices = @transform_1, window_bounds = array<i64: 288, 128>}, {transform_indices = @transform_2, window_bounds = array<i64: 32, 128>}, {transform_indices = @transform_3, window_bounds = array<i64: 16, 128>}]} {
    %c0 = arith.constant 0 : index
    %c0_0 = arith.constant 0 : index
    %0 = vector.load %arg2[%c0, %c0_0] : memref<32x288xbf16, #tpu.memory_space<vmem>>, vector<32x288xbf16>
    %c0_1 = arith.constant 0 : index
    %c0_2 = arith.constant 0 : index
    %1 = vector.load %arg3[%c0_1, %c0_2] : memref<288x128xbf16, #tpu.memory_space<vmem>>, vector<288x128xbf16>
    %cst = arith.constant dense<0.000000e+00> : vector<32x128xf32>
    %2 = tpu.matmul %0, %1, %cst {dimension_numbers = #tpu.dot_dimension_numbers<[1], [0], [0], [1], [0, 0, 1, 1], [], []>} : vector<32x288xbf16>, vector<288x128xbf16>, vector<32x128xf32> -> vector<32x128xf32>
    %3 = arith.truncf %2 : vector<32x128xf32> to vector<32x128xbf16>
    %c0_3 = arith.constant 0 : index
    %c0_4 = arith.constant 0 : index
    %4 = vector.load %arg4[%c0_3, %c0_4] : memref<32x128xbf16, #tpu.memory_space<vmem>>, vector<32x128xbf16>
    tpu.vector_store %arg4[%c0_3, %c0_4], %3 {strides = array<i32>} : memref<32x128xbf16, #tpu.memory_space<vmem>>, vector<32x128xbf16>,
    %c0_i32 = arith.constant 0 : i32
    %5 = arith.cmpi eq, %arg1, %c0_i32 : i32
    %6 = arith.extui %5 : i1 to i32
    %c0_i32_5 = arith.constant 0 : i32
    %7 = arith.cmpi ne, %6, %c0_i32_5 : i32
    scf.if %7 {
      %cst_15 = arith.constant 0.000000e+00 : f32
      %19 = vector.broadcast %cst_15 : f32 to vector<16x128xf32>
      %c0_16 = arith.constant 0 : index
      %c0_17 = arith.constant 0 : index
      %20 = vector.load %arg5[%c0_16, %c0_17] : memref<16x128xf32, #tpu.memory_space<vmem>>, vector<16x128xf32>
      tpu.vector_store %arg5[%c0_16, %c0_17], %19 {strides = array<i32>} : memref<16x128xf32, #tpu.memory_space<vmem>>, vector<16x128xf32>,
    } else {
    }
    %c0_6 = arith.constant 0 : index
    %c0_7 = arith.constant 0 : index
    %8 = vector.load %arg5[%c0_6, %c0_7] : memref<16x128xf32, #tpu.memory_space<vmem>>, vector<8x128xf32>
    %9 = vector.shape_cast %2 : vector<32x128xf32> to vector<4x8x128xf32>
    %cst_8 = arith.constant dense<0.000000e+00> : vector<8x128xf32>
    %10 = vector.multi_reduction <add>, %9, %cst_8 [0] : vector<4x8x128xf32> to vector<8x128xf32>
    %11 = arith.addf %8, %10 : vector<8x128xf32>
    %c0_9 = arith.constant 0 : index
    %c0_10 = arith.constant 0 : index
    %12 = vector.load %arg5[%c0_9, %c0_10] : memref<16x128xf32, #tpu.memory_space<vmem>>, vector<8x128xf32>
    tpu.vector_store %arg5[%c0_9, %c0_10], %11 {strides = array<i32>} : memref<16x128xf32, #tpu.memory_space<vmem>>, vector<8x128xf32>,
    %c8 = arith.constant 8 : index
    %c0_11 = arith.constant 0 : index
    %13 = vector.load %arg5[%c8, %c0_11] : memref<16x128xf32, #tpu.memory_space<vmem>>, vector<8x128xf32>
    %14 = arith.mulf %2, %2 : vector<32x128xf32>
    %15 = vector.shape_cast %14 : vector<32x128xf32> to vector<4x8x128xf32>
    %cst_12 = arith.constant dense<0.000000e+00> : vector<8x128xf32>
    %16 = vector.multi_reduction <add>, %15, %cst_12 [0] : vector<4x8x128xf32> to vector<8x128xf32>
    %17 = arith.addf %13, %16 : vector<8x128xf32>
    %c8_13 = arith.constant 8 : index
    %c0_14 = arith.constant 0 : index
    %18 = vector.load %arg5[%c8_13, %c0_14] : memref<16x128xf32, #tpu.memory_space<vmem>>, vector<8x128xf32>
    tpu.vector_store %arg5[%c8_13, %c0_14], %17 {strides = array<i32>} : memref<16x128xf32, #tpu.memory_space<vmem>>, vector<8x128xf32>,
    return
  }
  func.func @transform_0(%arg0: i32, %arg1: i32) -> (i32, i32) {
    %c1_i32 = arith.constant 1 : i32
    %0 = arith.muli %arg0, %c1_i32 : i32
    %1 = arith.addi %0, %arg1 : i32
    %c0_i32 = arith.constant 0 : i32
    %c0_i32_0 = arith.constant 0 : i32
    return %1, %c0_i32 : i32, i32
  }
  func.func @transform_1(%arg0: i32, %arg1: i32) -> (i32, i32) {
    %c0_i32 = arith.constant 0 : i32
    %c0_i32_0 = arith.constant 0 : i32
    %c0_i32_1 = arith.constant 0 : i32
    return %c0_i32, %c0_i32_0 : i32, i32
  }
  func.func @transform_2(%arg0: i32, %arg1: i32) -> (i32, i32) {
    %c1_i32 = arith.constant 1 : i32
    %0 = arith.muli %arg0, %c1_i32 : i32
    %1 = arith.addi %0, %arg1 : i32
    %c0_i32 = arith.constant 0 : i32
    %c0_i32_0 = arith.constant 0 : i32
    return %1, %c0_i32 : i32, i32
  }
  func.func @transform_3(%arg0: i32, %arg1: i32) -> (i32, i32) {
    %c0_i32 = arith.constant 0 : i32
    %c0_i32_0 = arith.constant 0 : i32
    return %arg0, %c0_i32 : i32, i32
  }
}

module attributes {stable_mosaic.version = 11 : i64} {
  func.func @_affine_relu_kernel(%arg0: i32, %arg1: memref<64x128xbf16, #tpu.memory_space<vmem>>, %arg2: memref<1x128xf32, #tpu.memory_space<vmem>>, %arg3: memref<1x128xf32, #tpu.memory_space<vmem>>, %arg4: memref<64x128xf32, #tpu.memory_space<vmem>>) attributes {dimension_semantics = [#tpu.dimension_semantics<parallel>], iteration_bounds = array<i64: 1>, scalar_prefetch = 0 : i64, scratch_operands = 0 : i64, tpu.core_type = #tpu.core_type<tc>, window_params = [{transform_indices = @transform_0, window_bounds = array<i64: 64, 128>}, {pipeline_mode = #tpu.pipeline_mode<synchronous>, transform_indices = @transform_1, window_bounds = array<i64: 1, 128>}, {pipeline_mode = #tpu.pipeline_mode<synchronous>, transform_indices = @transform_2, window_bounds = array<i64: 1, 128>}, {transform_indices = @transform_3, window_bounds = array<i64: 64, 128>}]} {
    %c0 = arith.constant 0 : index
    %c0_0 = arith.constant 0 : index
    %0 = vector.load %arg1[%c0, %c0_0] : memref<64x128xbf16, #tpu.memory_space<vmem>>, vector<64x128xbf16>
    %1 = arith.extf %0 : vector<64x128xbf16> to vector<64x128xf32>
    %c0_1 = arith.constant 0 : index
    %c0_2 = arith.constant 0 : index
    %2 = vector.load %arg2[%c0_1, %c0_2] : memref<1x128xf32, #tpu.memory_space<vmem>>, vector<1x128xf32>
    %3 = vector.broadcast %2 : vector<1x128xf32> to vector<64x128xf32>
    %4 = arith.mulf %1, %3 : vector<64x128xf32>
    %c0_3 = arith.constant 0 : index
    %c0_4 = arith.constant 0 : index
    %5 = vector.load %arg3[%c0_3, %c0_4] : memref<1x128xf32, #tpu.memory_space<vmem>>, vector<1x128xf32>
    %6 = vector.broadcast %5 : vector<1x128xf32> to vector<64x128xf32>
    %7 = arith.addf %4, %6 : vector<64x128xf32>
    %cst = arith.constant 0.000000e+00 : f32
    %8 = vector.broadcast %cst : f32 to vector<64x128xf32>
    %9 = arith.maximumf %7, %8 : vector<64x128xf32>
    %c0_5 = arith.constant 0 : index
    %c0_6 = arith.constant 0 : index
    %10 = vector.load %arg4[%c0_5, %c0_6] : memref<64x128xf32, #tpu.memory_space<vmem>>, vector<64x128xf32>
    tpu.vector_store %arg4[%c0_5, %c0_6], %9 {strides = array<i32>} : memref<64x128xf32, #tpu.memory_space<vmem>>, vector<64x128xf32>,
    return
  }
  func.func @transform_0(%arg0: i32) -> (i32, i32) {
    %c0_i32 = arith.constant 0 : i32
    %c0_i32_0 = arith.constant 0 : i32
    return %arg0, %c0_i32 : i32, i32
  }
  func.func @transform_1(%arg0: i32) -> (i32, i32) {
    %c0_i32 = arith.constant 0 : i32
    %c0_i32_0 = arith.constant 0 : i32
    %c0_i32_1 = arith.constant 0 : i32
    return %c0_i32, %c0_i32_0 : i32, i32
  }
  func.func @transform_2(%arg0: i32) -> (i32, i32) {
    %c0_i32 = arith.constant 0 : i32
    %c0_i32_0 = arith.constant 0 : i32
    %c0_i32_1 = arith.constant 0 : i32
    return %c0_i32, %c0_i32_0 : i32, i32
  }
  func.func @transform_3(%arg0: i32) -> (i32, i32) {
    %c0_i32 = arith.constant 0 : i32
    %c0_i32_0 = arith.constant 0 : i32
    return %arg0, %c0_i32 : i32, i32
  }
}

</mosaic_0001>

<llo_original>
// kernel: mul.4
$region0: #{mul.4}
  %s0 = inlined_call_operand.vmem [shape: f32[3,3,4,16], index: 0, kind: input, shape index: {}]
  %s1 = inlined_call_operand.vmem [shape: f32[36,16], index: 1, kind: output, shape index: {}]
  $region1: #{mul.4} parent=0
    #allocation0 [shape = 'u8[36864]{0}', space=vmem, size = 0x9000, scoped, tag = 'scoped mem for input reshape']
    %s3 = sshll.u32 1, 4
    %s4 = ssub.s32 %s3, 1
    %s5 = smul.addr 4, 8
    %s6 = scalar_lea.vmem %s0, %s5
    %v7 = vld [vmem:[%s6] sm:%s4]
    %s8 = scalar_lea.vmem [#allocation0], 64
    %9 = vst [vmem:[%s8] sm:%s4] %v7
    %s10 = smul.addr 4, 7
    %s11 = scalar_lea.vmem %s0, %s10
    %v12 = vld [vmem:[%s11] sm:%s4]
    %s13 = scalar_lea.vmem [#allocation0], 56
    %14 = vst [vmem:[%s13] sm:%s4] %v12
    %s15 = smul.addr 4, 6
    %s16 = scalar_lea.vmem %s0, %s15
    %v17 = vld [vmem:[%s16] sm:%s4]
    %s18 = scalar_lea.vmem [#allocation0], 48
    %19 = vst [vmem:[%s18] sm:%s4] %v17
    %s20 = smul.addr 4, 5
    %s21 = scalar_lea.vmem %s0, %s20
    %v22 = vld [vmem:[%s21] sm:%s4]
    %s23 = scalar_lea.vmem [#allocation0], 40
    %24 = vst [vmem:[%s23] sm:%s4] %v22
    %s25 = smul.addr 4, 4
    %s26 = scalar_lea.vmem %s0, %s25
    %v27 = vld [vmem:[%s26] sm:%s4]
    %s28 = scalar_lea.vmem [#allocation0], 32
    %29 = vst [vmem:[%s28] sm:%s4] %v27
    %s30 = smul.addr 4, 3
    %s31 = scalar_lea.vmem %s0, %s30
    %v32 = vld [vmem:[%s31] sm:%s4]
    %s33 = scalar_lea.vmem [#allocation0], 24
    %34 = vst [vmem:[%s33] sm:%s4] %v32
    %s35 = smul.addr 4, 2
    %s36 = scalar_lea.vmem %s0, %s35
    %v37 = vld [vmem:[%s36] sm:%s4]
    %s38 = scalar_lea.vmem [#allocation0], 16
    %39 = vst [vmem:[%s38] sm:%s4] %v37
    %s40 = scalar_lea.vmem %s0, 4
    %v41 = vld [vmem:[%s40] sm:%s4]
    %s42 = scalar_lea.vmem [#allocation0], 8
    %43 = vst [vmem:[%s42] sm:%s4] %v41
    %v44 = vld [vmem:[%s0] sm:%s4]
    %45 = vst [vmem:[#allocation0] sm:%s4] %v44
    %v46 = vld [vmem:[#allocation0] sm:$0xf]
    %vm47 = vcmask 130048
    %48 = vst.msk [vmem:[%s1] sm:$0xf] %vm47, %v46
    %s49 = scalar_lea.vmem [#allocation0], 8
    %v50 = vld [vmem:[%s49] sm:$0xf]
    %vm51 = vcmask 130048
    %s52 = scalar_lea.vmem %s1, 4
    %53 = vst.msk [vmem:[%s52] sm:$0xf] %vm51, %v50
    %s54 = scalar_lea.vmem [#allocation0], 16
    %v55 = vld [vmem:[%s54] sm:$0xf]
    %vm56 = vcmask 130048
    %s57 = scalar_lea.vmem %s1, 8
    %58 = vst.msk [vmem:[%s57] sm:$0xf] %vm56, %v55
    %s59 = scalar_lea.vmem [#allocation0], 24
    %v60 = vld [vmem:[%s59] sm:$0xf]
    %vm61 = vcmask 130048
    %s62 = scalar_lea.vmem %s1, 12
    %63 = vst.msk [vmem:[%s62] sm:$0xf] %vm61, %v60
    %s64 = scalar_lea.vmem [#allocation0], 32
    %v65 = vld [vmem:[%s64] sm:$0xf]
    %vm66 = vcmask 130048
    %s67 = scalar_lea.vmem %s1, 16
    %68 = vst.msk [vmem:[%s67] sm:$0xf] %vm66, %v65
    %s69 = scalar_lea.vmem [#allocation0], 40
    %v70 = vld [vmem:[%s69] sm:$0xf]
    %vm71 = vcmask 130048
    %s72 = scalar_lea.vmem %s1, 20
    %73 = vst.msk [vmem:[%s72] sm:$0xf] %vm71, %v70
    %s74 = scalar_lea.vmem [#allocation0], 48
    %v75 = vld [vmem:[%s74] sm:$0xf]
    %vm76 = vcmask 130048
    %s77 = scalar_lea.vmem %s1, 24
    %78 = vst.msk [vmem:[%s77] sm:$0xf] %vm76, %v75
    %s79 = scalar_lea.vmem [#allocation0], 56
    %v80 = vld [vmem:[%s79] sm:$0xf]
    %vm81 = vcmask 130048
    %s82 = scalar_lea.vmem %s1, 28
    %83 = vst.msk [vmem:[%s82] sm:$0xf] %vm81, %v80
    %s84 = scalar_lea.vmem [#allocation0], 64
    %v85 = vld [vmem:[%s84] sm:$0xf]
    %vm86 = vcmask 130048
    %s87 = scalar_lea.vmem %s1, 32
    %88 = vst.msk [vmem:[%s87] sm:$0xf] %vm86, %v85

// kernel: tile.13
$region0: #{tile.13}
  #allocation0 [shape = 's32[1]{0}', space=sflag, size = 0x4, scoped, tag = 'scoped memory for tile.13']
  %s0 = inlined_call_operand.vmem [shape: f32[16], index: 0, kind: input, shape index: {}]
  %s1 = inlined_call_operand.vmem [shape: f32[8,16], index: 1, kind: output, shape index: {}]
  // Predicated region
  $region2: #{tile.13} parent=0 // pred_check
    _
  $region3: #{tile.13} parent=0 // pred_check_branch
    %3 = sbr.rel (0) target = $region5
  $region4: #{tile.13} parent=0 // pred_region
    _
  $region5: #{tile.13} parent=0 // pred_fallthru
    _
  %v4 = vld [vmem:[%s0] ss:$0 sm:$0xff]
  %5 = vst [vmem:[%s1] sm:$0xff] %v4

// kernel: tile.14
$region0: #{tile.14}
  %s0 = inlined_call_operand.vmem [shape: f32[8,16], index: 0, kind: input, shape index: {}]
  %s1 = inlined_call_operand.vmem [shape: f32[1,128], index: 1, kind: output, shape index: {}]
  $region1: #{tile.14} parent=0
    #allocation0 [shape = 'u8[4096]{0}', space=vmem, size = 0x1000, scoped, tag = 'scoped mem for output reshape']
    %v2 = vld [vmem:[%s0] sm:$0x1]
    %vm3 = vcmask 130048
    %4 = vst.msk [vmem:[#allocation0] sm:$0x1] %vm3, %v2
    %s5 = scalar_lea.vmem %s0, 7
    %v6 = vld [vmem:[%s5] sm:$0x1]
    %7 = vrot.lane.b32.xlu0 %v6, 112
    %v8 = vpop.permute.xlu0 %7
    %vm9 = vcmask 1048448
    %10 = vst.msk [vmem:[#allocation0] sm:$0x1] %vm9, %v8
    %s11 = scalar_lea.vmem %s0, 6
    %v12 = vld [vmem:[%s11] sm:$0x1]
    %13 = vrot.lane.b32.xlu0 %v12, 96
    %v14 = vpop.permute.xlu0 %13
    %vm15 = vcmask 917248
    %16 = vst.msk [vmem:[#allocation0] sm:$0x1] %vm15, %v14
    %s17 = scalar_lea.vmem %s0, 5
    %v18 = vld [vmem:[%s17] sm:$0x1]
    %19 = vrot.lane.b32.xlu0 %v18, 80
    %v20 = vpop.permute.xlu0 %19
    %vm21 = vcmask 786048
    %22 = vst.msk [vmem:[#allocation0] sm:$0x1] %vm21, %v20
    %s23 = scalar_lea.vmem %s0, 4
    %v24 = vld [vmem:[%s23] sm:$0x1]
    %25 = vrot.lane.b32.xlu0 %v24, 64
    %v26 = vpop.permute.xlu0 %25
    %vm27 = vcmask 654848
    %28 = vst.msk [vmem:[#allocation0] sm:$0x1] %vm27, %v26
    %s29 = scalar_lea.vmem %s0, 3
    %v30 = vld [vmem:[%s29] sm:$0x1]
    %31 = vrot.lane.b32.xlu0 %v30, 48
    %v32 = vpop.permute.xlu0 %31
    %vm33 = vcmask 523648
    %34 = vst.msk [vmem:[#allocation0] sm:$0x1] %vm33, %v32
    %s35 = scalar_lea.vmem %s0, 2
    %v36 = vld [vmem:[%s35] sm:$0x1]
    %37 = vrot.lane.b32.xlu0 %v36, 32
    %v38 = vpop.permute.xlu0 %37
    %vm39 = vcmask 392448
    %40 = vst.msk [vmem:[#allocation0] sm:$0x1] %vm39, %v38
    %s41 = scalar_lea.vmem %s0, 1
    %v42 = vld [vmem:[%s41] sm:$0x1]
    %43 = vrot.lane.b32.xlu0 %v42, 16
    %v44 = vpop.permute.xlu0 %43
    %vm45 = vcmask 261248
    %46 = vst.msk [vmem:[#allocation0] sm:$0x1] %vm45, %v44
    %s48 = sshll.u32 1, 1
    %s49 = ssub.s32 %s48, 1
    %v51 = vld [vmem:[#allocation0] sm:%s49]
    %s52 = sshll.u32 1, 1
    %s53 = ssub.s32 %s52, 1
    %54 = vst [vmem:[%s1] sm:%s53] %v51

// kernel: conv2d_batchnorm_relu.3
$region0: #{conv2d_batchnorm_relu.3}
  #allocation0 [shape = 'u32[]', space=smem, size = 0x4, offset = 0x4, fixed_abs, tag = 'smem constant byte address 0x4 - core index']
  #allocation1 [shape = 'u32[144,128]{1,0:T(1,128)}', space=vmem, size = 0x12000, scoped, tag = 'internal scratch']
  %s0 = inlined_call_operand.vmem [shape: bf16[64,128], index: 0, kind: input, shape index: {}]
  %s1 = inlined_call_operand.vmem [shape: f32[1,128], index: 1, kind: input, shape index: {}]
  %s2 = inlined_call_operand.vmem [shape: f32[1,128], index: 2, kind: input, shape index: {}]
  %s3 = inlined_call_operand.vmem [shape: f32[64,128], index: 3, kind: output, shape index: {}]
  %s4 = sld [smem:[#allocation0]]
  $region22: #{conv2d_batchnorm_relu.3} parent=0
    _
  %s6 = ssub.s32 1, %s4
  %s7 = scalar_select 0, %s6, %s4
  // Predicated region
  $region2: #{conv2d_batchnorm_relu.3} parent=0 // pred_check
    _
  $region3: #{conv2d_batchnorm_relu.3} parent=0 // pred_check_branch
    %9 = sbr.rel (0) target = $region5
  $region4: #{conv2d_batchnorm_relu.3} parent=0 // pred_region
    _
  $region5: #{conv2d_batchnorm_relu.3} parent=0 // pred_fallthru
    _
  // Predicated region
  $region6: #{conv2d_batchnorm_relu.3} parent=0 // pred_check
    _
  $region7: #{conv2d_batchnorm_relu.3} parent=0 // pred_check_branch
    %11 = sbr.rel (0) target = $region9
  $region8: #{conv2d_batchnorm_relu.3} parent=0 // pred_region
    _
  $region9: #{conv2d_batchnorm_relu.3} parent=0 // pred_fallthru
    _
  // Predicated region
  $region10: #{conv2d_batchnorm_relu.3} parent=0 // pred_check
    _
  $region11: #{conv2d_batchnorm_relu.3} parent=0 // pred_check_branch
    %13 = sbr.rel (0) target = $region13
  $region12: #{conv2d_batchnorm_relu.3} parent=0 // pred_region
    _
  $region13: #{conv2d_batchnorm_relu.3} parent=0 // pred_fallthru
    _
  %v14 = vld [vmem:[%s0] sm:$0xf]
  %v15 = vld [vmem:[%s0 + $0x4] sm:$0xf]
  %v16 = vld [vmem:[%s0 + $0x8] sm:$0xf]
  %v17 = vld [vmem:[%s0 + $0xc] sm:$0xf]
  %v18 = vld [vmem:[%s0 + $0x10] sm:$0xf]
  %v19 = vld [vmem:[%s0 + $0x14] sm:$0xf]
  %v20 = vld [vmem:[%s0 + $0x18] sm:$0xf]
  %v21 = vld [vmem:[%s0 + $0x1c] sm:$0xf]
  %v22 = vunpack.c.l.bf16 %v14
  %v23 = vunpack.c.l.bf16 %v15
  %v24 = vunpack.c.l.bf16 %v16
  %v25 = vunpack.c.l.bf16 %v17
  %v26 = vunpack.c.l.bf16 %v18
  %v27 = vunpack.c.l.bf16 %v19
  %v28 = vunpack.c.l.bf16 %v20
  %v29 = vunpack.c.l.bf16 %v21
  %v30 = vld [vmem:[%s1] sm:$0x1]
  %v32 = vlaneseq
  %v33 = vshrl.u32 %v32, 7
  %v34 = vsub.s32 0, %v33
  %v35 = vrot.slane %v30, %v34
  %v37 = vmul.f32 %v22, %v35
  %v38 = vmul.f32 %v23, %v35
  %v39 = vmul.f32 %v24, %v35
  %v40 = vmul.f32 %v25, %v35
  %v41 = vmul.f32 %v26, %v35
  %v42 = vmul.f32 %v27, %v35
  %v43 = vmul.f32 %v28, %v35
  %v44 = vmul.f32 %v29, %v35
  %v45 = vld [vmem:[%s2] sm:$0x1]
  %v47 = vlaneseq
  %v48 = vshrl.u32 %v47, 7
  %v49 = vsub.s32 0, %v48
  %v50 = vrot.slane %v45, %v49
  %v52 = vadd.f32 %v37, %v50
  %v53 = vadd.f32 %v38, %v50
  %v54 = vadd.f32 %v39, %v50
  %v55 = vadd.f32 %v40, %v50
  %v56 = vadd.f32 %v41, %v50
  %v57 = vadd.f32 %v42, %v50
  %v58 = vadd.f32 %v43, %v50
  %v59 = vadd.f32 %v44, %v50
  %v60 = vmax.f32 %v52, 0.0
  %v61 = vmax.f32 %v53, 0.0
  %v62 = vmax.f32 %v54, 0.0
  %v63 = vmax.f32 %v55, 0.0
  %v64 = vmax.f32 %v56, 0.0
  %v65 = vmax.f32 %v57, 0.0
  %v66 = vmax.f32 %v58, 0.0
  %v67 = vmax.f32 %v59, 0.0
  %68 = vst [vmem:[%s3] sm:$0xff] %v60
  %69 = vst [vmem:[%s3 + $0x8] sm:$0xff] %v61
  %70 = vst [vmem:[%s3 + $0x10] sm:$0xff] %v62
  %71 = vst [vmem:[%s3 + $0x18] sm:$0xff] %v63
  %72 = vst [vmem:[%s3 + $0x20] sm:$0xff] %v64
  %73 = vst [vmem:[%s3 + $0x28] sm:$0xff] %v65
  %74 = vst [vmem:[%s3 + $0x30] sm:$0xff] %v66
  %75 = vst [vmem:[%s3 + $0x38] sm:$0xff] %v67
  // Predicated region
  $region14: #{conv2d_batchnorm_relu.3} parent=0 // pred_check
    _
  $region15: #{conv2d_batchnorm_relu.3} parent=0 // pred_check_branch
    %77 = sbr.rel (0) target = $region17
  $region16: #{conv2d_batchnorm_relu.3} parent=0 // pred_region
    _
  $region17: #{conv2d_batchnorm_relu.3} parent=0 // pred_fallthru
    _
  // Predicated region
  $region18: #{conv2d_batchnorm_relu.3} parent=0 // pred_check
    _
  $region19: #{conv2d_batchnorm_relu.3} parent=0 // pred_check_branch
    %79 = sbr.rel (0) target = $region21
  $region20: #{conv2d_batchnorm_relu.3} parent=0 // pred_region
    _
  $region21: #{conv2d_batchnorm_relu.3} parent=0 // pred_fallthru
    _

// kernel: conv2d_batchnorm_relu.2
$region0: #{conv2d_batchnorm_relu.2}
  #allocation0 [shape = 'u32[]', space=smem, size = 0x4, offset = 0x4, fixed_abs, tag = 'smem constant byte address 0x4 - core index']
  #allocation1 [shape = 'u32[144,128]{1,0:T(1,128)}', space=vmem, size = 0x12000, scoped, tag = 'internal scratch']
  %s0 = inlined_call_operand.vmem [shape: bf16[64,288], index: 0, kind: input, shape index: {}]
  %s1 = inlined_call_operand.vmem [shape: bf16[288,128], index: 1, kind: input, shape index: {}]
  %s2 = inlined_call_operand.vmem [shape: bf16[64,128], index: 2, kind: output, shape index: {0}]
  %s3 = inlined_call_operand.vmem [shape: f32[32,128], index: 3, kind: output, shape index: {1}]
  %4 = xla_tuple %s2, %s3
  %s5 = sld [smem:[#allocation0]]
  $region53: #{conv2d_batchnorm_relu.2} parent=0
    _
  %s7 = ssub.s32 1, %s5
  %s8 = scalar_select 0, %s7, %s5
  loop: start=0, step=1, limit=4
  $region2: #{conv2d_batchnorm_relu.2} parent=0 // loop_pre_header
    _
  $region3: #{conv2d_batchnorm_relu.2} parent=0 // loop_header
    %s10 = sphi 0, %s14
    %p11 = scmp.ge.s32.totalorder %s10, 4
    %s17 = sphi 0, %s29
    %s18 = sphi 0, %s25
    %s19 = sphi 0, %s17
    %s20 = sphi 0, %s18
    %s21 = sphi 0, %s19
    %s22 = sphi 0, %s20
    %s34 = sphi 0, %s36
    %s37 = sphi 0, %s34
    %s38 = sphi 0, %s37
    %s54 = sphi 0, %s38
    %s58 = sphi 0, %s58
    %s60 = sphi 0, %s58
    %s61 = sphi 0, %s60
    %s75 = sphi 0, %s61
    %s83 = sphi 0, %s85
    %s86 = sphi 0, %s83
    %s87 = sphi 0, %s86
    %s103 = sphi 0, %s87
    %s109 = sphi 0, %s111
    %s112 = sphi 0, %s109
    %s113 = sphi 0, %s112
    %s129 = sphi 0, %s113
  $region4: #{conv2d_batchnorm_relu.2} parent=0 // loop_header_branch
    %13 = sbr.rel (%p11) target = $region8
  $region5: #{conv2d_batchnorm_relu.2} parent=0 // loop_body
    %s15 = ssub.s32 %s10, 1
    %s16 = ssub.s32 %s10, 2
    %s23 = sadd.s32 1, %s18
    %p24 = scmp.ge.s32.totalorder %s23, 1
    %s25 = scalar_select %p24, 0, %s23
    %s26 = sadd.s32 1, %s17
    %s27 = scalar_select %p24, %s26, %s17
    %p28 = scmp.ge.s32.totalorder %s27, 2
    %s29 = scalar_select %p28, 0, %s27
    %s30 = sadd.s32 %s17, %s18
    %s31 = sadd.s32 %s29, %s25
    %s32 = ssub.s32 %s30, %s31
    %p33 = scmp.eq.s32.totalorder %s32, 0
    %s35 = sadd.s32 %s34, 1
    %s36 = scalar_select %p33, %s34, %s35
    %p39 = pneg %p33
    %p40 = scmp.eq.s32.totalorder %s10, 1
    %p41 = por %p39, %p40
    %p42 = scmp.ne.s32.totalorder %s34, %s37
    %p43 = scmp.eq.s32.totalorder %s10, 0
    %p44 = por %p42, %p43
    %p45 = scmp.ne.s32.totalorder %s34, %s37
    %p46 = scmp.eq.s32.totalorder %s15, 1
    %p47 = por %p45, %p46
    %p48 = scmp.ne.s32.totalorder %s37, %s38
    %p49 = scmp.eq.s32.totalorder %s15, 0
    %p50 = por %p48, %p49
    %p51 = scmp.ne.s32.totalorder %s37, %s38
    %p52 = scmp.eq.s32.totalorder %s16, 1
    %p53 = por %p51, %p52
    %p55 = scmp.ne.s32.totalorder %s38, %s54
    %p56 = scmp.eq.s32.totalorder %s16, 0
    %p57 = por %p55, %p56
    %s59 = sadd.s32 %s58, 1
    %p62 = scmp.eq.s32.totalorder %s10, 1
    %p63 = scmp.ne.s32.totalorder %s58, %s60
    %p64 = scmp.eq.s32.totalorder %s10, 0
    %p65 = por %p63, %p64
    %p66 = scmp.ne.s32.totalorder %s58, %s60
    %p67 = scmp.eq.s32.totalorder %s15, 1
    %p68 = por %p66, %p67
    %p69 = scmp.ne.s32.totalorder %s60, %s61
    %p70 = scmp.eq.s32.totalorder %s15, 0
    %p71 = por %p69, %p70
    %p72 = scmp.ne.s32.totalorder %s60, %s61
    %p73 = scmp.eq.s32.totalorder %s16, 1
    %p74 = por %p72, %p73
    %p76 = scmp.ne.s32.totalorder %s61, %s75
    %p77 = scmp.eq.s32.totalorder %s16, 0
    %p78 = por %p76, %p77
    %s79 = sadd.s32 %s17, %s18
    %s80 = sadd.s32 %s29, %s25
    %s81 = ssub.s32 %s79, %s80
    %p82 = scmp.eq.s32.totalorder %s81, 0
    %s84 = sadd.s32 %s83, 1
    %s85 = scalar_select %p82, %s83, %s84
    %p88 = pneg %p82
    %p89 = scmp.eq.s32.totalorder %s10, 1
    %p90 = por %p88, %p89
    %p91 = scmp.ne.s32.totalorder %s83, %s86
    %p92 = scmp.eq.s32.totalorder %s10, 0
    %p93 = por %p91, %p92
    %p94 = scmp.ne.s32.totalorder %s83, %s86
    %p95 = scmp.eq.s32.totalorder %s15, 1
    %p96 = por %p94, %p95
    %p97 = scmp.ne.s32.totalorder %s86, %s87
    %p98 = scmp.eq.s32.totalorder %s15, 0
    %p99 = por %p97, %p98
    %p100 = scmp.ne.s32.totalorder %s86, %s87
    %p101 = scmp.eq.s32.totalorder %s16, 1
    %p102 = por %p100, %p101
    %p104 = scmp.ne.s32.totalorder %s87, %s103
    %p105 = scmp.eq.s32.totalorder %s16, 0
    %p106 = por %p104, %p105
    %s107 = ssub.s32 %s17, %s29
    %p108 = scmp.eq.s32.totalorder %s107, 0
    %s110 = sadd.s32 %s109, 1
    %s111 = scalar_select %p108, %s109, %s110
    %p114 = pneg %p108
    %p115 = scmp.eq.s32.totalorder %s10, 1
    %p116 = por %p114, %p115
    %p117 = scmp.ne.s32.totalorder %s109, %s112
    %p118 = scmp.eq.s32.totalorder %s10, 0
    %p119 = por %p117, %p118
    %p120 = scmp.ne.s32.totalorder %s109, %s112
    %p121 = scmp.eq.s32.totalorder %s15, 1
    %p122 = por %p120, %p121
    %p123 = scmp.ne.s32.totalorder %s112, %s113
    %p124 = scmp.eq.s32.totalorder %s15, 0
    %p125 = por %p123, %p124
    %p126 = scmp.ne.s32.totalorder %s112, %s113
    %p127 = scmp.eq.s32.totalorder %s16, 1
    %p128 = por %p126, %p127
    %p130 = scmp.ne.s32.totalorder %s113, %s129
    %p131 = scmp.eq.s32.totalorder %s16, 0
    %p132 = por %p130, %p131
    %p133 = scmp.le.s32.totalorder 1, %s10
    %p134 = scmp.lt.s32.totalorder %s10, 3
    %p135 = pnand %p133, %p134
    %p136 = pneg %p135
    // Predicated region
    $region9: #{conv2d_batchnorm_relu.2} parent=5 // pred_check
      _
    $region10: #{conv2d_batchnorm_relu.2} parent=5 // pred_check_branch
      %138 = sbr.rel (%p135) target = $region12
    $region11: #{conv2d_batchnorm_relu.2} parent=5 // pred_region
      %s139 = ssub.s32 %s10, 1
      // Predicated region
      $region13: #{conv2d_batchnorm_relu.2} parent=11 // pred_check
        %p140 = pneg %p71
      $region14: #{conv2d_batchnorm_relu.2} parent=11 // pred_check_branch
        %142 = sbr.rel (%p140) target = $region16
      $region15: #{conv2d_batchnorm_relu.2} parent=11 // pred_region
        _
      $region16: #{conv2d_batchnorm_relu.2} parent=11 // pred_fallthru
        _
    $region12: #{conv2d_batchnorm_relu.2} parent=5 // pred_fallthru
      _
    %p143 = scmp.lt.s32.totalorder %s10, 2
    // Predicated region
    $region17: #{conv2d_batchnorm_relu.2} parent=5 // pred_check
      %p144 = pneg %p143
    $region18: #{conv2d_batchnorm_relu.2} parent=5 // pred_check_branch
      %146 = sbr.rel (%p144) target = $region20
    $region19: #{conv2d_batchnorm_relu.2} parent=5 // pred_region
      // Predicated region
      $region21: #{conv2d_batchnorm_relu.2} parent=19 // pred_check
        %p147 = pneg %p44
      $region22: #{conv2d_batchnorm_relu.2} parent=19 // pred_check_branch
        %149 = sbr.rel (%p147) target = $region24
      $region23: #{conv2d_batchnorm_relu.2} parent=19 // pred_region
        %s150 = sadd.s32 %s17, %s18
        %s151 = smul.u32 4, %s150
        %p152 = scmp.lt.s32.totalorder %s151, 7
        %s153 = scalar_select %p152, %s151, 7
        %s154 = smul.addr %s153, 3
        %s155 = smul.addr %s154, 4
        %s156 = scalar_lea.vmem %s0, %s155
        %s157 = sadd.s32 %s17, %s18
        %s158 = smul.u32 4, %s157
      $region24: #{conv2d_batchnorm_relu.2} parent=19 // pred_fallthru
        _
    $region20: #{conv2d_batchnorm_relu.2} parent=5 // pred_fallthru
      _
    %p159 = scmp.le.s32.totalorder 1, %s10
    %p160 = scmp.lt.s32.totalorder %s10, 3
    %p161 = pnand %p159, %p160
    %p162 = pneg %p161
    // Predicated region
    $region25: #{conv2d_batchnorm_relu.2} parent=5 // pred_check
      _
    $region26: #{conv2d_batchnorm_relu.2} parent=5 // pred_check_branch
      %164 = sbr.rel (%p161) target = $region28
    $region27: #{conv2d_batchnorm_relu.2} parent=5 // pred_region
      %s165 = ssub.s32 %s10, 1
      %s166 = sadd.s32 %s19, %s20
      %s167 = smul.u32 4, %s166
      %p168 = scmp.lt.s32.totalorder %s167, 7
      %s169 = scalar_select %p168, %s167, 7
      %s170 = smul.addr %s169, 3
      %s171 = smul.addr %s170, 4
      %s172 = scalar_lea.vmem %s0, %s171
      %p173 = pneg %p50
      %p174 = pneg %p47
      %p175 = pneg %p71
      %p176 = pneg %p68
      %p177 = pneg %p99
      %p178 = pneg %p96
      %s179 = sadd.s32 %s19, %s20
      %s180 = smul.u32 4, %s179
      %p181 = scmp.lt.s32.totalorder %s180, 7
      %s182 = scalar_select %p181, %s180, 7
      %s183 = smul.addr %s182, 4
      %s184 = scalar_lea.vmem %s2, %s183
      %p185 = pneg %p125
      %p186 = pneg %p122
      %s187 = smul.u32 2, %s19
      %p188 = scmp.lt.s32.totalorder %s187, 3
      %s189 = scalar_select %p188, %s187, 3
      %s190 = smul.addr %s189, 8
      %s191 = scalar_lea.vmem %s3, %s190
      %s192 = sadd.s32 %s19, %s20
      %s193 = smul.u32 4, %s192
      %p194 = scmp.lt.s32.totalorder %s193, 7
      %s195 = scalar_select %p194, %s193, 7
      %s196 = smul.addr %s195, 3
      %s197 = smul.addr %s196, 4
      %s198 = scalar_lea.vmem %s0, %s197
      %s199 = sadd.s32 %s19, %s20
      %s200 = smul.u32 4, %s199
      %s201 = sadd.s32 %s19, %s20
      %s202 = smul.u32 4, %s201
      %p203 = scmp.lt.s32.totalorder %s202, 7
      %s204 = scalar_select %p203, %s202, 7
      %s205 = smul.addr %s204, 4
      %s206 = scalar_lea.vmem %s2, %s205
      %s207 = sadd.s32 %s19, %s20
      %s208 = smul.u32 4, %s207
      %s209 = smul.u32 2, %s19
      %p210 = scmp.lt.s32.totalorder %s209, 3
      %s211 = scalar_select %p210, %s209, 3
      %s212 = smul.addr %s211, 8
      %s213 = scalar_lea.vmem %s3, %s212
      %s214 = smul.u32 2, %s19
      %v216 = vld [vmem:[%s198] sm:$0xff]
      %v217 = vld [vmem:[%s198 + $0x8] sm:$0xf]
      %v218 = vld [vmem:[%s198 + $0xc] sm:$0xff]
      %v219 = vld [vmem:[%s198 + $0x14] sm:$0xf]
      %v220 = vld [vmem:[%s198 + $0x18] sm:$0xff]
      %v221 = vld [vmem:[%s198 + $0x20] sm:$0xf]
      %v222 = vld [vmem:[%s198 + $0x24] sm:$0xff]
      %v223 = vld [vmem:[%s198 + $0x2c] sm:$0xf]
      %v224 = vld [vmem:[%s1] sm:$0xf]
      %v225 = vld [vmem:[%s1 + $0x4] sm:$0xf]
      %v226 = vld [vmem:[%s1 + $0x8] sm:$0xf]
      %v227 = vld [vmem:[%s1 + $0xc] sm:$0xf]
      %v228 = vld [vmem:[%s1 + $0x10] sm:$0xf]
      %v229 = vld [vmem:[%s1 + $0x14] sm:$0xf]
      %v230 = vld [vmem:[%s1 + $0x18] sm:$0xf]
      %v231 = vld [vmem:[%s1 + $0x1c] sm:$0xf]
      %v232 = vld [vmem:[%s1 + $0x20] sm:$0xf]
      %v233 = vld [vmem:[%s1 + $0x24] sm:$0xf]
      %v234 = vld [vmem:[%s1 + $0x28] sm:$0xf]
      %v235 = vld [vmem:[%s1 + $0x2c] sm:$0xf]
      %v236 = vld [vmem:[%s1 + $0x30] sm:$0xf]
      %v237 = vld [vmem:[%s1 + $0x34] sm:$0xf]
      %v238 = vld [vmem:[%s1 + $0x38] sm:$0xf]
      %v239 = vld [vmem:[%s1 + $0x3c] sm:$0xf]
      %v240 = vld [vmem:[%s1 + $0x40] sm:$0xf]
      %v241 = vld [vmem:[%s1 + $0x44] sm:$0xf]
      %v242 = vld [vmem:[%s1 + $0x48] sm:$0xf]
      %v243 = vld [vmem:[%s1 + $0x4c] sm:$0xf]
      %v244 = vld [vmem:[%s1 + $0x50] sm:$0xf]
      %v245 = vld [vmem:[%s1 + $0x54] sm:$0xf]
      %v246 = vld [vmem:[%s1 + $0x58] sm:$0xf]
      %v247 = vld [vmem:[%s1 + $0x5c] sm:$0xf]
      %v248 = vld [vmem:[%s1 + $0x60] sm:$0xf]
      %v249 = vld [vmem:[%s1 + $0x64] sm:$0xf]
      %v250 = vld [vmem:[%s1 + $0x68] sm:$0xf]
      %v251 = vld [vmem:[%s1 + $0x6c] sm:$0xf]
      %v252 = vld [vmem:[%s1 + $0x70] sm:$0xf]
      %v253 = vld [vmem:[%s1 + $0x74] sm:$0xf]
      %v254 = vld [vmem:[%s1 + $0x78] sm:$0xf]
      %v255 = vld [vmem:[%s1 + $0x7c] sm:$0xf]
      %v256 = vld [vmem:[%s1 + $0x80] sm:$0xf]
      %v257 = vld [vmem:[%s1 + $0x84] sm:$0xf]
      %v258 = vld [vmem:[%s1 + $0x88] sm:$0xf]
      %v259 = vld [vmem:[%s1 + $0x8c] sm:$0xf]
      %v268 = vunpack.c.l.b16 %v216
      %v269 = vunpack.c.h.b16 %v216
      %v270 = vunpack.c.l.b16 %v217
      %v271 = vunpack.c.l.b16 %v218
      %v272 = vunpack.c.h.b16 %v218
      %v273 = vunpack.c.l.b16 %v219
      %v274 = vunpack.c.l.b16 %v220
      %v275 = vunpack.c.h.b16 %v220
      %v276 = vunpack.c.l.b16 %v221
      %v277 = vunpack.c.l.b16 %v222
      %v278 = vunpack.c.h.b16 %v222
      %v279 = vunpack.c.l.b16 %v223
      %v280 = vpack.c.b16 %v271, %v268
      %v281 = vpack.c.b16 %v272, %v269
      %v282 = vpack.c.b16 %v273, %v270
      %v283 = vpack.c.b16 %v277, %v274
      %v284 = vpack.c.b16 %v278, %v275
      %v285 = vpack.c.b16 %v279, %v276
      %v326 = vunpack.c.l.b16 %v224
      %v327 = vunpack.c.l.b16 %v225
      %v328 = vunpack.c.l.b16 %v226
      %v329 = vunpack.c.l.b16 %v227
      %v330 = vunpack.c.l.b16 %v228
      %v331 = vunpack.c.l.b16 %v229
      %v332 = vunpack.c.l.b16 %v230
      %v333 = vunpack.c.l.b16 %v231
      %v334 = vunpack.c.l.b16 %v232
      %v335 = vunpack.c.l.b16 %v233
      %v336 = vunpack.c.l.b16 %v234
      %v337 = vunpack.c.l.b16 %v235
      %v338 = vunpack.c.l.b16 %v236
      %v339 = vunpack.c.l.b16 %v237
      %v340 = vunpack.c.l.b16 %v238
      %v341 = vunpack.c.l.b16 %v239
      %v342 = vunpack.c.l.b16 %v240
      %v343 = vunpack.c.l.b16 %v241
      %v344 = vunpack.c.l.b16 %v242
      %v345 = vunpack.c.l.b16 %v243
      %v346 = vunpack.c.l.b16 %v244
      %v347 = vunpack.c.l.b16 %v245
      %v348 = vunpack.c.l.b16 %v246
      %v349 = vunpack.c.l.b16 %v247
      %v350 = vunpack.c.l.b16 %v248
      %v351 = vunpack.c.l.b16 %v249
      %v352 = vunpack.c.l.b16 %v250
      %v353 = vunpack.c.l.b16 %v251
      %v354 = vunpack.c.l.b16 %v252
      %v355 = vunpack.c.l.b16 %v253
      %v356 = vunpack.c.l.b16 %v254
      %v357 = vunpack.c.l.b16 %v255
      %v358 = vunpack.c.l.b16 %v256
      %v359 = vunpack.c.l.b16 %v257
      %v360 = vunpack.c.l.b16 %v258
      %v361 = vunpack.c.l.b16 %v259
      %v362 = vpack.c.b16 %v327, %v326
      %v363 = vpack.c.b16 %v329, %v328
      %v364 = vpack.c.b16 %v331, %v330
      %v365 = vpack.c.b16 %v333, %v332
      %v366 = vpack.c.b16 %v335, %v334
      %v367 = vpack.c.b16 %v337, %v336
      %v368 = vpack.c.b16 %v339, %v338
      %v369 = vpack.c.b16 %v341, %v340
      %v370 = vpack.c.b16 %v343, %v342
      %v371 = vpack.c.b16 %v345, %v344
      %v372 = vpack.c.b16 %v347, %v346
      %v373 = vpack.c.b16 %v349, %v348
      %v374 = vpack.c.b16 %v351, %v350
      %v375 = vpack.c.b16 %v353, %v352
      %v376 = vpack.c.b16 %v355, %v354
      %v377 = vpack.c.b16 %v357, %v356
      %v378 = vpack.c.b16 %v359, %v358
      %v379 = vpack.c.b16 %v361, %v360
      %vm398 = vcmask 261120
      %v400 = vsel %vm398, %v282, 0
      %v403 = vsel %vm398, %v285, 0
      %405 = vmatprep.subr.bf16.mxu0 0
      %406 = vmatpush1.bf16.msra.mxu0 %v369
      %407 = vmatprep.subr.bf16.mxu0 0
      %408 = vmatpush1.bf16.msra.mxu0 %v368
      %409 = vmatprep.subr.bf16.mxu0 0
      %410 = vmatpush1.bf16.msra.mxu0 %v367
      %411 = vmatprep.subr.bf16.mxu0 0
      %412 = vmatpush1.bf16.msra.mxu0 %v366
      %413 = vmatprep.subr.bf16.mxu0 0
      %414 = vmatpush1.bf16.msra.mxu0 %v365
      %415 = vmatprep.subr.bf16.mxu0 0
      %416 = vmatpush1.bf16.msra.mxu0 %v364
      %417 = vmatprep.subr.bf16.mxu0 0
      %418 = vmatpush1.bf16.msra.mxu0 %v363
      %419 = vmatprep.subr.bf16.mxu0 0
      %420 = vmatpush1.bf16.msra.mxu0 %v362
      %421 = vmatprep.subr.bf16.mxu0 0
      %422 = vmatpush2.bf16.msra.mxu0 %v377
      %423 = vmatprep.subr.bf16.mxu0 0
      %424 = vmatpush2.bf16.msra.mxu0 %v376
      %425 = vmatprep.subr.bf16.mxu0 0
      %426 = vmatpush2.bf16.msra.mxu0 %v375
      %427 = vmatprep.subr.bf16.mxu0 0
      %428 = vmatpush2.bf16.msra.mxu0 %v374
      %429 = vmatprep.subr.bf16.mxu0 0
      %430 = vmatpush2.bf16.msra.mxu0 %v373
      %431 = vmatprep.subr.bf16.mxu0 0
      %432 = vmatpush2.bf16.msra.mxu0 %v372
      %433 = vmatprep.subr.bf16.mxu0 0
      %434 = vmatpush2.bf16.msra.mxu0 %v371
      %435 = vmatprep.subr.bf16.mxu0 0
      %436 = vmatpush2.bf16.msra.mxu0 %v370
      %437 = vmatprep.mubr.bf16.mxu0 %v281
      %438 = vmatmul.mubr.bf16.gmra.mxu0 %v280
      %v439 = vpop.f32.mrf.mxu0
      %v440 = vadd.f32 0.0, %v439
      %v441 = vpop.f32.mrf.mxu0
      %v442 = vpop.f32.mrf.mxu0
      %v443 = vadd.f32 0.0, %v442
      %v444 = vpop.f32.mrf.mxu0
      %445 = vmatprep.mubr.bf16.mxu0 %v284
      %446 = vmatmul.mubr.bf16.gmra.mxu0 %v283
      %v447 = vpop.f32.mrf.mxu0
      %v448 = vadd.f32 0.0, %v447
      %v449 = vpop.f32.mrf.mxu0
      %v450 = vpop.f32.mrf.mxu0
      %v451 = vadd.f32 0.0, %v450
      %v452 = vpop.f32.mrf.mxu0
      %453 = vdwg.mxu0
      %454 = vmatprep.subr.bf16.mxu0 0
      %455 = vmatpush1.bf16.msra.mxu0 0
      %456 = vmatprep.subr.bf16.mxu0 0
      %457 = vmatpush1.bf16.msra.mxu0 0
      %458 = vmatprep.subr.bf16.mxu0 0
      %459 = vmatpush1.bf16.msra.mxu0 0
      %460 = vmatprep.subr.bf16.mxu0 0
      %461 = vmatpush1.bf16.msra.mxu0 0
      %462 = vmatprep.subr.bf16.mxu0 0
      %463 = vmatpush1.bf16.msra.mxu0 0
      %464 = vmatprep.subr.bf16.mxu0 0
      %465 = vmatpush1.bf16.msra.mxu0 0
      %466 = vmatprep.subr.bf16.mxu0 0
      %467 = vmatpush1.bf16.msra.mxu0 %v379
      %468 = vmatprep.subr.bf16.mxu0 0
      %469 = vmatpush1.bf16.msra.mxu0 %v378
      %470 = vmatprep.subr.bf16.mxu0 0
      %471 = vmatpush2.bf16.msra.mxu0 0
      %472 = vmatprep.subr.bf16.mxu0 0
      %473 = vmatpush2.bf16.msra.mxu0 0
      %474 = vmatprep.subr.bf16.mxu0 0
      %475 = vmatpush2.bf16.msra.mxu0 0
      %476 = vmatprep.subr.bf16.mxu0 0
      %477 = vmatpush2.bf16.msra.mxu0 0
      %478 = vmatprep.subr.bf16.mxu0 0
      %479 = vmatpush2.bf16.msra.mxu0 0
      %480 = vmatprep.subr.bf16.mxu0 0
      %481 = vmatpush2.bf16.msra.mxu0 0
      %482 = vmatprep.subr.bf16.mxu0 0
      %483 = vmatpush2.bf16.msra.mxu0 0
      %484 = vmatprep.subr.bf16.mxu0 0
      %485 = vmatpush2.bf16.msra.mxu0 0
      %486 = vmatprep.mubr.bf16.mxu0 0
      %487 = vmatmul.mubr.bf16.gmra.mxu0 %v400
      %v488 = vpop.f32.mrf.mxu0
      %v489 = vadd.f32 %v440, %v488
      %v490 = vpop.f32.mrf.mxu0
      %v491 = vpop.f32.mrf.mxu0
      %v492 = vadd.f32 %v443, %v491
      %v493 = vpop.f32.mrf.mxu0
      %494 = vmatprep.mubr.bf16.mxu0 0
      %495 = vmatmul.mubr.bf16.gmra.mxu0 %v403
      %v496 = vpop.f32.mrf.mxu0
      %v497 = vadd.f32 %v448, %v496
      %v498 = vpop.f32.mrf.mxu0
      %v499 = vpop.f32.mrf.mxu0
      %v500 = vadd.f32 %v451, %v499
      %v501 = vpop.f32.mrf.mxu0
      %502 = vdwg.mxu0
      %v503 = vpack.c.bf16 %v492, %v489
      %v504 = vpack.c.bf16 %v500, %v497
      %v507 = vunpack.c.l.b16 %v503
      %v508 = vunpack.c.h.b16 %v503
      %v509 = vunpack.c.l.b16 %v504
      %v510 = vunpack.c.h.b16 %v504
      %v511 = vpack.c.b16 %v507, %v507
      %v512 = vpack.c.b16 %v508, %v508
      %v513 = vpack.c.b16 %v509, %v509
      %v514 = vpack.c.b16 %v510, %v510
      %519 = vst [vmem:[%s206] sm:$0xf] %v511
      %520 = vst [vmem:[%s206 + $0x4] sm:$0xf] %v512
      %521 = vst [vmem:[%s206 + $0x8] sm:$0xf] %v513
      %522 = vst [vmem:[%s206 + $0xc] sm:$0xf] %v514
      %p523 = scmp.eq.s32.totalorder %s20, 0
      // Predicated region
      $region29: #{conv2d_batchnorm_relu.2} parent=27 // pred_check
        %p524 = pneg %p523
      $region30: #{conv2d_batchnorm_relu.2} parent=27 // pred_check_branch
        %526 = sbr.rel (%p524) target = $region32
      $region31: #{conv2d_batchnorm_relu.2} parent=27 // pred_region
        %527 = vst [vmem:[%s213] sm:$0xff] 0.0
        %528 = vst [vmem:[%s213 + $0x8] sm:$0xff] 0.0
      $region32: #{conv2d_batchnorm_relu.2} parent=27 // pred_fallthru
        _
      %v529 = vld [vmem:[%s213] sm:$0xff]
      %v530 = vadd.f32 %v489, %v492
      %v531 = vadd.f32 %v530, %v497
      %v532 = vadd.f32 %v531, %v500
      %v533 = vadd.f32 %v529, %v532
      %534 = vst [vmem:[%s213] sm:$0xff] %v533
      %v535 = vld [vmem:[%s213 + $0x8] sm:$0xff]
      %v536 = vmul.f32 %v489, %v489
      %v537 = vmul.f32 %v492, %v492
      %v538 = vmul.f32 %v497, %v497
      %v539 = vmul.f32 %v500, %v500
      %v540 = vadd.f32 %v536, %v537
      %v541 = vadd.f32 %v540, %v538
      %v542 = vadd.f32 %v541, %v539
      %v543 = vadd.f32 %v535, %v542
      %544 = vst [vmem:[%s213 + $0x8] sm:$0xff] %v543
      %s545 = sadd.s32 %s19, %s20
      %s546 = smul.u32 4, %s545
      %p547 = scmp.lt.s32.totalorder %s546, 7
      %s548 = scalar_select %p547, %s546, 7
      %s549 = smul.addr %s548, 4
      %s550 = scalar_lea.vmem %s2, %s549
      %s551 = smul.u32 2, %s19
      %p552 = scmp.lt.s32.totalorder %s551, 3
      %s553 = scalar_select %p552, %s551, 3
      %s554 = smul.addr %s553, 8
      %s555 = scalar_lea.vmem %s3, %s554
      // Predicated region
      $region33: #{conv2d_batchnorm_relu.2} parent=27 // pred_check
        %p556 = pneg %p96
      $region34: #{conv2d_batchnorm_relu.2} parent=27 // pred_check_branch
        %558 = sbr.rel (%p556) target = $region36
      $region35: #{conv2d_batchnorm_relu.2} parent=27 // pred_region
        %s559 = sadd.s32 %s19, %s20
        %s560 = smul.u32 4, %s559
      $region36: #{conv2d_batchnorm_relu.2} parent=27 // pred_fallthru
        _
      // Predicated region
      $region37: #{conv2d_batchnorm_relu.2} parent=27 // pred_check
        %p561 = pneg %p122
      $region38: #{conv2d_batchnorm_relu.2} parent=27 // pred_check_branch
        %563 = sbr.rel (%p561) target = $region40
      $region39: #{conv2d_batchnorm_relu.2} parent=27 // pred_region
        %s564 = smul.u32 2, %s19
      $region40: #{conv2d_batchnorm_relu.2} parent=27 // pred_fallthru
        _
    $region28: #{conv2d_batchnorm_relu.2} parent=5 // pred_fallthru
      _
    %p565 = scmp.le.s32.totalorder 2, %s10
    // Predicated region
    $region41: #{conv2d_batchnorm_relu.2} parent=5 // pred_check
      %p566 = pneg %p565
    $region42: #{conv2d_batchnorm_relu.2} parent=5 // pred_check_branch
      %568 = sbr.rel (%p566) target = $region44
    $region43: #{conv2d_batchnorm_relu.2} parent=5 // pred_region
      %s569 = ssub.s32 %s10, 2
      // Predicated region
      $region45: #{conv2d_batchnorm_relu.2} parent=43 // pred_check
        %p570 = pneg %p102
      $region46: #{conv2d_batchnorm_relu.2} parent=43 // pred_check_branch
        %572 = sbr.rel (%p570) target = $region48
      $region47: #{conv2d_batchnorm_relu.2} parent=43 // pred_region
        %s573 = sadd.s32 %s21, %s22
        %s574 = smul.u32 4, %s573
        %p575 = scmp.lt.s32.totalorder %s574, 7
        %s576 = scalar_select %p575, %s574, 7
        %s577 = smul.addr %s576, 4
        %s578 = scalar_lea.vmem %s2, %s577
      $region48: #{conv2d_batchnorm_relu.2} parent=43 // pred_fallthru
        _
      // Predicated region
      $region49: #{conv2d_batchnorm_relu.2} parent=43 // pred_check
        %p579 = pneg %p128
      $region50: #{conv2d_batchnorm_relu.2} parent=43 // pred_check_branch
        %581 = sbr.rel (%p579) target = $region52
      $region51: #{conv2d_batchnorm_relu.2} parent=43 // pred_region
        %s582 = smul.u32 2, %s21
        %p583 = scmp.lt.s32.totalorder %s582, 3
        %s584 = scalar_select %p583, %s582, 3
        %s585 = smul.addr %s584, 8
        %s586 = scalar_lea.vmem %s3, %s585
      $region52: #{conv2d_batchnorm_relu.2} parent=43 // pred_fallthru
        _
    $region44: #{conv2d_batchnorm_relu.2} parent=5 // pred_fallthru
      _
  $region6: #{conv2d_batchnorm_relu.2} parent=0 // loop_footer
    %s14 = sadd.s32 1, %s10
  $region7: #{conv2d_batchnorm_relu.2} parent=0 // loop_footer_branch
    %9 = sbr.rel target = $region3
  $region8: #{conv2d_batchnorm_relu.2} parent=0 // loop_exit
    _

</llo_original>
